<compile_context>
chip_gen: v7x
topology: tpu7x:2x2x1
jax: 0.10.0
libtpu: 0.0.40
codegen_flags: <defaults>
</compile_context>

<pallas_src>
import numpy as np
import jax
import jax.numpy as jnp
from jax.experimental import pallas as pl
from jax.experimental.pallas import tpu as pltpu


# ----------------------------------------------------------------------------
# Trace-time construction of the banded blur+downsample matrices.
# Matches AntiAliasInterpolation2d exactly:
#   F.pad(zeros, ka), depthwise KxK normalized Gaussian, F.interpolate(nearest).
# ----------------------------------------------------------------------------
def _gauss_1d(sigma, k_size):
    mean = (k_size - 1) / 2.0
    t = np.arange(k_size, dtype=np.float64)
    e = np.exp(-((t - mean) ** 2) / (2.0 * sigma ** 2))
    return e / e.sum()


def _nearest_src_idx(in_size, scale):
    out_size = int(np.floor(in_size * scale))
    # F.interpolate(mode='nearest'): src = floor(dst * in/out).  Integer math
    # avoids fp boundary off-by-one for non-integer ratios.
    idx = (np.arange(out_size, dtype=np.int64) * in_size) // out_size
    return np.clip(idx, 0, in_size - 1), out_size


def _build_blur_ds_mats(H, W, scale):
    sigma = (1.0 / scale - 1.0) / 2.0
    k_size = 2 * round(sigma * 4) + 1
    ka = k_size // 2
    g = _gauss_1d(sigma, k_size)

    src_h, Ho = _nearest_src_idx(H, scale)
    src_w, Wo = _nearest_src_idx(W, scale)

    # y[a,b] = sum_{kh,kw} g[kh] g[kw] X[src_h[a]+kh-ka, src_w[b]+kw-ka]  (0 if OOB)
    Ah = np.zeros((Ho, H), np.float32)
    for a in range(Ho):
        for kk in range(k_size):
            h = int(src_h[a]) + kk - ka
            if 0 <= h < H:
                Ah[a, h] += g[kk]
    Aw = np.zeros((W, Wo), np.float32)
    for b in range(Wo):
        for kk in range(k_size):
            w = int(src_w[b]) + kk - ka
            if 0 <= w < W:
                Aw[w, b] += g[kk]
    return jnp.asarray(Ah), jnp.asarray(Aw), Ho, Wo


# ----------------------------------------------------------------------------
# Tiling: planes-per-block chosen against a generation-safe VMEM tile budget.
# ----------------------------------------------------------------------------
def _pick_block_planes(nc, H, W, outs_meta, itemsize, tile_budget=12 * 1024 * 1024):
    per_plane = 2 * itemsize * H * W                                    # input block, x2 bufs
    per_plane += 2 * itemsize * sum(ho * wo for ho, wo in outs_meta)    # output blocks, x2 bufs
    per_plane += 4 * H * W                                              # f32 upcast of block
    per_plane += 4 * sum(H * wo + ho * H + ho * wo for ho, wo in outs_meta)  # T, Ah bcast, Y
    shared = 2 * 4 * sum(ho * H + W * wo for ho, wo in outs_meta)       # Ah/Aw, x2 bufs
    avail = max(tile_budget - shared, per_plane)
    bp = int(max(1, min(nc, avail // per_plane, 32)))
    if nc >= 2:
        bp = max(1, min(bp, nc // 2))   # >= 2 grid steps -> both v7x TCs get work
    # Prefer a bp that divides nc (no padded tail, balanced steps); otherwise
    # fall back to a cdiv grid with a masked tail block.
    for cand in range(bp, 0, -1):
        if nc % cand == 0 and 2 * cand >= bp:
            bp = cand
            break
    grid_steps = int(pl.cdiv(nc, bp))
    vmem_estimate = shared + bp * per_plane
    return bp, grid_steps, vmem_estimate


# ----------------------------------------------------------------------------
# Fused multi-scale Pallas kernel.
# ----------------------------------------------------------------------------
def _fused_pyramid(x, scales):
    """x: (N, C, H, W); scales: tuple of floats != 1.0.
    Returns list of (N, C, Ho_s, Wo_s) arrays in x.dtype, one per scale,
    computed by a single pallas_call that reads the full-res input once."""
    N, C, H, W = x.shape
    nc = N * C
    xp = x.reshape(nc, H, W)                       # no dtype cast: minimal HBM traffic

    mats, outs_meta = [], []
    for s in scales:
        ah, aw, Ho, Wo = _build_blur_ds_mats(H, W, float(s))
        mats.append((ah, aw))
        outs_meta.append((Ho, Wo))
    n_scales = len(scales)

    bp, grid_steps, vmem_estimate = _pick_block_planes(
        nc, H, W, outs_meta, jnp.dtype(x.dtype).itemsize)

    def kernel(*refs):
        x_ref = refs[0]
        mat_refs = refs[1:1 + 2 * n_scales]
        out_refs = refs[1 + 2 * n_scales:]
        # Single upcast of the resident block; (bp,H,W)->(bp*H,W) is a
        # layout-free collapse when H is sublane-aligned (multiple of 8).
        x2d = x_ref[...].astype(jnp.float32).reshape(bp * H, W)
        for si in range(n_scales):
            ho, wo = outs_meta[si]
            ah = mat_refs[2 * si][...]                                   # (ho, H)
            aw = mat_refs[2 * si + 1][...]                               # (W, wo)
            # Stage 1: ONE big MXU matmul over all bp planes (M = bp*H).
            t = jnp.dot(x2d, aw, preferred_element_type=jnp.float32)     # (bp*H, wo)
            t3 = t.reshape(bp, H, wo)
            # Stage 2: batched matmul over planes (no per-plane Python unroll).
            ahb = jnp.broadcast_to(ah, (bp, ho, H))
            y = jnp.einsum('pah,phw->paw', ahb, t3,
                           preferred_element_type=jnp.float32)           # (bp, ho, wo)
            out_refs[si][...] = y.astype(out_refs[si].dtype)

    in_specs = [pl.BlockSpec((bp, H, W), lambda i: (i, 0, 0))]
    flat_mats = []
    for (ah, aw), (ho, wo) in zip(mats, outs_meta):
        in_specs.append(pl.BlockSpec((ho, H), lambda i: (0, 0)))
        in_specs.append(pl.BlockSpec((W, wo), lambda i: (0, 0)))
        flat_mats += [ah, aw]

    out_shape = tuple(jax.ShapeDtypeStruct((nc, ho, wo), x.dtype) for ho, wo in outs_meta)
    out_specs = tuple(pl.BlockSpec((bp, ho, wo), lambda i: (i, 0, 0)) for ho, wo in outs_meta)

    # Scoped-VMEM limit: above v5e's 16 MiB default, below v7x's 64 MiB physical.
    vmem_limit = int(min(48 * 1024 * 1024, max(32 * 1024 * 1024, 2 * vmem_estimate)))

    results = pl.pallas_call(
        kernel,
        out_shape=out_shape,
        grid_spec=pltpu.PrefetchScalarGridSpec(
            num_scalar_prefetch=0,
            grid=(grid_steps,),
            in_specs=in_specs,
            out_specs=out_specs,
        ),
        compiler_params=pltpu.CompilerParams(
            dimension_semantics=("parallel",),
            vmem_limit_bytes=vmem_limit),
    )(xp, *flat_mats)

    if not isinstance(results, (tuple, list)):
        results = (results,)
    return [r.reshape(N, C, ho, wo) for r, (ho, wo) in zip(results, outs_meta)]


# ----------------------------------------------------------------------------
# Public wrappers (match the PyTorch module semantics).
# ----------------------------------------------------------------------------
def anti_alias_interpolation(x, scale):
    """Single-scale AntiAliasInterpolation2d.forward equivalent."""
    if float(scale) == 1.0:
        return x
    return _fused_pyramid(x, (float(scale),))[0]


def image_pyramide(x, scales):
    """ImagePyramide.forward equivalent: dict of anti-aliased downscales."""
    out = {}
    ds = [s for s in scales if float(s) != 1.0]
    ds_results = _fused_pyramid(x, tuple(float(s) for s in ds)) if ds else []
    it = iter(ds_results)
    for s in scales:
        if float(s) == 1.0:
            out["prediction_" + str(s)] = x
        else:
            out["prediction_" + str(s)] = next(it)
    return out


# Pure-JAX reference (same math, no Pallas) for a correctness self-check.
def _reference_pyramide(x, scales):
    out = {}
    for scale in scales:
        if float(scale) == 1.0:
            out["prediction_" + str(scale)] = x
            continue
        N, C, H, W = x.shape
        ah, aw, _, _ = _build_blur_ds_mats(H, W, float(scale))
        y = jnp.einsum("ah,nchw,wb->ncab", ah, x.astype(jnp.float32), aw)
        out["prediction_" + str(scale)] = y.astype(x.dtype)
    return out


# ----------------------------------------------------------------------------
if __name__ == "__main__":
    num_channels = 4
    scales = (1, 0.5, 0.25)

    key = jax.random.PRNGKey(0)
    x = jax.random.normal(key, (2, num_channels, 16, 16), jnp.float32)  # NCHW

    pyr_fn = jax.jit(lambda inp: image_pyramide(inp, scales))
    out = jax.block_until_ready(pyr_fn(x))

    # Shape checks (match PyTorch ImagePyramide output dict).
    assert out["prediction_1"].shape == (2, num_channels, 16, 16)
    assert out["prediction_0.5"].shape == (2, num_channels, 8, 8)
    assert out["prediction_0.25"].shape == (2, num_channels, 4, 4)

    # Numerical check against the pure-JAX reference.
    ref = _reference_pyramide(x, scales)
    for k in out:
        assert jnp.all(jnp.isfinite(out[k])), k
        assert jnp.allclose(out[k], ref[k], atol=1e-4, rtol=1e-4), k

    print("KERNEL_OK")
</pallas_src>

<mosaic_0001>
module attributes {stable_mosaic.version = 11 : i64} {
  func.func @kernel(%arg0: i32, %arg1: memref<4x16x16xf32, #tpu.memory_space<vmem>>, %arg2: memref<8x16xf32, #tpu.memory_space<vmem>>, %arg3: memref<16x8xf32, #tpu.memory_space<vmem>>, %arg4: memref<4x16xf32, #tpu.memory_space<vmem>>, %arg5: memref<16x4xf32, #tpu.memory_space<vmem>>, %arg6: memref<4x8x8xf32, #tpu.memory_space<vmem>>, %arg7: memref<4x4x4xf32, #tpu.memory_space<vmem>>) attributes {dimension_semantics = [#tpu.dimension_semantics<parallel>], iteration_bounds = array<i64: 2>, scalar_prefetch = 0 : i64, scratch_operands = 0 : i64, tpu.core_type = #tpu.core_type<tc>, window_params = [{transform_indices = @transform_0, window_bounds = array<i64: 4, 16, 16>}, {pipeline_mode = #tpu.pipeline_mode<synchronous>, transform_indices = @transform_1, window_bounds = array<i64: 8, 16>}, {pipeline_mode = #tpu.pipeline_mode<synchronous>, transform_indices = @transform_2, window_bounds = array<i64: 16, 8>}, {pipeline_mode = #tpu.pipeline_mode<synchronous>, transform_indices = @transform_3, window_bounds = array<i64: 4, 16>}, {pipeline_mode = #tpu.pipeline_mode<synchronous>, transform_indices = @transform_4, window_bounds = array<i64: 16, 4>}, {transform_indices = @transform_5, window_bounds = array<i64: 4, 8, 8>}, {transform_indices = @transform_6, window_bounds = array<i64: 4, 4, 4>}]} {
    %c0 = arith.constant 0 : index
    %c0_0 = arith.constant 0 : index
    %c0_1 = arith.constant 0 : index
    %0 = vector.load %arg1[%c0, %c0_0, %c0_1] : memref<4x16x16xf32, #tpu.memory_space<vmem>>, vector<4x16x16xf32>
    %1 = vector.shape_cast %0 : vector<4x16x16xf32> to vector<64x16xf32>
    %c0_2 = arith.constant 0 : index
    %c0_3 = arith.constant 0 : index
    %2 = vector.load %arg2[%c0_2, %c0_3] : memref<8x16xf32, #tpu.memory_space<vmem>>, vector<8x16xf32>
    %c0_4 = arith.constant 0 : index
    %c0_5 = arith.constant 0 : index
    %3 = vector.load %arg3[%c0_4, %c0_5] : memref<16x8xf32, #tpu.memory_space<vmem>>, vector<16x8xf32>
    %cst = arith.constant dense<0.000000e+00> : vector<64x8xf32>
    %4 = tpu.matmul %1, %3, %cst {dimension_numbers = #tpu.dot_dimension_numbers<[1], [0], [0], [1], [0, 0, 1, 1], [], []>} : vector<64x16xf32>, vector<16x8xf32>, vector<64x8xf32> -> vector<64x8xf32>
    %5 = vector.shape_cast %4 : vector<64x8xf32> to vector<4x16x8xf32>
    %6 = vector.shape_cast %2 : vector<8x16xf32> to vector<1x8x16xf32>
    %7 = vector.broadcast %6 : vector<1x8x16xf32> to vector<4x8x16xf32>
    "tpu.trace_start"() <{level = 10 : i32, message = "pah,phw->paw"}> : () -> ()
    %cst_6 = arith.constant dense<0.000000e+00> : vector<4x8x8xf32>
    %8 = tpu.matmul %7, %5, %cst_6 {dimension_numbers = #tpu.dot_dimension_numbers<[2], [1], [1], [2], [0, 0, 0, 1, 1, 2], [0], [0]>} : vector<4x8x16xf32>, vector<4x16x8xf32>, vector<4x8x8xf32> -> vector<4x8x8xf32>
    "tpu.trace_stop"() : () -> ()
    %c0_7 = arith.constant 0 : index
    %c0_8 = arith.constant 0 : index
    %c0_9 = arith.constant 0 : index
    %9 = vector.load %arg6[%c0_7, %c0_8, %c0_9] : memref<4x8x8xf32, #tpu.memory_space<vmem>>, vector<4x8x8xf32>
    tpu.vector_store %arg6[%c0_7, %c0_8, %c0_9], %8 {strides = array<i32>} : memref<4x8x8xf32, #tpu.memory_space<vmem>>, vector<4x8x8xf32>,
    %c0_10 = arith.constant 0 : index
    %c0_11 = arith.constant 0 : index
    %10 = vector.load %arg4[%c0_10, %c0_11] : memref<4x16xf32, #tpu.memory_space<vmem>>, vector<4x16xf32>
    %c0_12 = arith.constant 0 : index
    %c0_13 = arith.constant 0 : index
    %11 = vector.load %arg5[%c0_12, %c0_13] : memref<16x4xf32, #tpu.memory_space<vmem>>, vector<16x4xf32>
    %cst_14 = arith.constant dense<0.000000e+00> : vector<64x4xf32>
    %12 = tpu.matmul %1, %11, %cst_14 {dimension_numbers = #tpu.dot_dimension_numbers<[1], [0], [0], [1], [0, 0, 1, 1], [], []>} : vector<64x16xf32>, vector<16x4xf32>, vector<64x4xf32> -> vector<64x4xf32>
    %13 = vector.shape_cast %12 : vector<64x4xf32> to vector<4x16x4xf32>
    %14 = vector.shape_cast %10 : vector<4x16xf32> to vector<1x4x16xf32>
    %15 = vector.broadcast %14 : vector<1x4x16xf32> to vector<4x4x16xf32>
    "tpu.trace_start"() <{level = 10 : i32, message = "pah,phw->paw"}> : () -> ()
    %cst_15 = arith.constant dense<0.000000e+00> : vector<4x4x4xf32>
    %16 = tpu.matmul %15, %13, %cst_15 {dimension_numbers = #tpu.dot_dimension_numbers<[2], [1], [1], [2], [0, 0, 0, 1, 1, 2], [0], [0]>} : vector<4x4x16xf32>, vector<4x16x4xf32>, vector<4x4x4xf32> -> vector<4x4x4xf32>
    "tpu.trace_stop"() : () -> ()
    %c0_16 = arith.constant 0 : index
    %c0_17 = arith.constant 0 : index
    %c0_18 = arith.constant 0 : index
    %17 = vector.load %arg7[%c0_16, %c0_17, %c0_18] : memref<4x4x4xf32, #tpu.memory_space<vmem>>, vector<4x4x4xf32>
    tpu.vector_store %arg7[%c0_16, %c0_17, %c0_18], %16 {strides = array<i32>} : memref<4x4x4xf32, #tpu.memory_space<vmem>>, vector<4x4x4xf32>,
    return
  }
  func.func @transform_0(%arg0: i32) -> (i32, i32, i32) {
    %c0_i32 = arith.constant 0 : i32
    %c0_i32_0 = arith.constant 0 : i32
    %c0_i32_1 = arith.constant 0 : i32
    return %arg0, %c0_i32, %c0_i32_0 : i32, i32, i32
  }
  func.func @transform_1(%arg0: i32) -> (i32, i32) {
    %c0_i32 = arith.constant 0 : i32
    %c0_i32_0 = arith.constant 0 : i32
    %c0_i32_1 = arith.constant 0 : i32
    return %c0_i32, %c0_i32_0 : i32, i32
  }
  func.func @transform_2(%arg0: i32) -> (i32, i32) {
    %c0_i32 = arith.constant 0 : i32
    %c0_i32_0 = arith.constant 0 : i32
    %c0_i32_1 = arith.constant 0 : i32
    return %c0_i32, %c0_i32_0 : i32, i32
  }
  func.func @transform_3(%arg0: i32) -> (i32, i32) {
    %c0_i32 = arith.constant 0 : i32
    %c0_i32_0 = arith.constant 0 : i32
    %c0_i32_1 = arith.constant 0 : i32
    return %c0_i32, %c0_i32_0 : i32, i32
  }
  func.func @transform_4(%arg0: i32) -> (i32, i32) {
    %c0_i32 = arith.constant 0 : i32
    %c0_i32_0 = arith.constant 0 : i32
    %c0_i32_1 = arith.constant 0 : i32
    return %c0_i32, %c0_i32_0 : i32, i32
  }
  func.func @transform_5(%arg0: i32) -> (i32, i32, i32) {
    %c0_i32 = arith.constant 0 : i32
    %c0_i32_0 = arith.constant 0 : i32
    %c0_i32_1 = arith.constant 0 : i32
    return %arg0, %c0_i32, %c0_i32_0 : i32, i32, i32
  }
  func.func @transform_6(%arg0: i32) -> (i32, i32, i32) {
    %c0_i32 = arith.constant 0 : i32
    %c0_i32_0 = arith.constant 0 : i32
    %c0_i32_1 = arith.constant 0 : i32
    return %arg0, %c0_i32, %c0_i32_0 : i32, i32, i32
  }
}

</mosaic_0001>

<llo_original>
// kernel: _lambda_.1
$region0: #{_lambda_.1}
  #allocation0 [shape = 'u32[]', space=smem, size = 0x4, offset = 0x4, fixed_abs, tag = 'smem constant byte address 0x4 - core index']
  #allocation1 [shape = 'u32[144,128]{1,0:T(1,128)}', space=vmem, size = 0x12000, scoped, tag = 'internal scratch']
  %s0 = inlined_call_operand.hbm [shape: f32[8,16,16], index: 0, kind: input, shape index: {}]
  %s1 = inlined_call_operand.hbm [shape: f32[8,16], index: 1, kind: input, shape index: {}]
  %s2 = inlined_call_operand.hbm [shape: f32[16,8], index: 2, kind: input, shape index: {}]
  %s3 = inlined_call_operand.hbm [shape: f32[4,16], index: 3, kind: input, shape index: {}]
  %s4 = inlined_call_operand.vmem [shape: f32[16,4], index: 4, kind: input, shape index: {}]
  %s5 = inlined_call_operand.hbm [shape: f32[8,8,8], index: 5, kind: output, shape index: {0}]
  %s6 = inlined_call_operand.hbm [shape: f32[8,4,4], index: 6, kind: output, shape index: {1}]
  %7 = xla_tuple %s5, %s6
  %s8 = sld [smem:[#allocation0]]
  $region77: #{_lambda_.1} parent=0
    _
  %s10 = ssub.s32 1, %s8
  %s11 = scalar_select 0, %s10, %s8
  $region1: #{_lambda_.1} parent=0
    #allocation2 [shape = 'u8[65536]{0}', space=vmem, size = 0x10000, scoped, tag = 'input window, operand 0']
    #allocation3 [shape = 's32[2]{0}', space=sflag, size = 0x8, scoped, tag = 'scoped memory for _lambda_.1']
    #allocation4 [shape = 's32[2]{0}', space=sflag, size = 0x8, scoped, tag = 'scoped memory for _lambda_.1']
    #allocation5 [shape = 'u8[4096]{0}', space=vmem, size = 0x1000, scoped, tag = 'input window, operand 1, single buffered']
    #allocation6 [shape = 's32[1]{0}', space=sflag, size = 0x4, scoped, tag = 'scoped memory for _lambda_.1']
    #allocation7 [shape = 'u8[8192]{0}', space=vmem, size = 0x2000, scoped, tag = 'input window, operand 2, single buffered']
    #allocation8 [shape = 'u8[2048]{0}', space=vmem, size = 0x800, scoped, tag = 'input window, operand 3, single buffered']
    #allocation9 [shape = 's32[1]{0}', space=sflag, size = 0x4, scoped, tag = 'scoped memory for _lambda_.1']
    #allocation10 [shape = 'u8[32768]{0}', space=vmem, size = 0x8000, scoped, tag = 'output window, operand 0']
    #allocation11 [shape = 'u8[16384]{0}', space=vmem, size = 0x4000, scoped, tag = 'output window, operand 1']
    #allocation12 [shape = 's32[2]{0}', space=sflag, size = 0x8, scoped, tag = 'scoped memory for _lambda_.1']
    %12 = vsyncpa [#allocation3], 0
    %s13 = scalar_lea.sflag [#allocation3], 1
    %14 = vsyncpa %s13, 0
    %15 = vsyncpa [#allocation6], 0
    %16 = vsyncpa [#allocation9], 0
    %17 = vsyncpa [#allocation4], 0
    %s18 = scalar_lea.sflag [#allocation4], 1
    %19 = vsyncpa %s18, 0
    %20 = vsyncpa [#allocation12], 0
    %s21 = scalar_lea.sflag [#allocation12], 1
    %22 = vsyncpa %s21, 0
    loop: start=0, step=1, limit=4
    $region2: #{_lambda_.1} parent=1 // loop_pre_header
      _
    $region3: #{_lambda_.1} parent=1 // loop_header
      %s24 = sphi 0, %s28
      %p25 = scmp.ge.s32.totalorder %s24, 4
      %s34 = sphi 0, %s36
      %s37 = sphi 0, %s34
      %s38 = sphi 0, %s37
      %s54 = sphi 0, %s38
      %s58 = sphi 0, %s58
      %s60 = sphi 0, %s58
      %s61 = sphi 0, %s60
      %s75 = sphi 0, %s61
      %s79 = sphi 0, %s79
      %s81 = sphi 0, %s79
      %s82 = sphi 0, %s81
      %s96 = sphi 0, %s82
      %s100 = sphi 0, %s100
      %s102 = sphi 0, %s100
      %s103 = sphi 0, %s102
      %s117 = sphi 0, %s103
      %s121 = sphi 0, %s121
      %s123 = sphi 0, %s121
      %s124 = sphi 0, %s123
      %s138 = sphi 0, %s124
      %s144 = sphi 0, %s146
      %s147 = sphi 0, %s144
      %s148 = sphi 0, %s147
      %s164 = sphi 0, %s148
      %s170 = sphi 0, %s172
      %s173 = sphi 0, %s170
      %s174 = sphi 0, %s173
      %s190 = sphi 0, %s174
    $region4: #{_lambda_.1} parent=1 // loop_header_branch
      %27 = sbr.rel (%p25) target = $region8
    $region5: #{_lambda_.1} parent=1 // loop_body
      %s29 = ssub.s32 %s24, 1
      %s30 = ssub.s32 %s24, 2
      %s31 = sadd.s32 %s24, 1
      %s32 = ssub.s32 %s24, %s31
      %p33 = scmp.eq.s32.totalorder %s32, 0
      %s35 = sadd.s32 %s34, 1
      %s36 = scalar_select %p33, %s34, %s35
      %p39 = pneg %p33
      %p40 = scmp.eq.s32.totalorder %s24, 1
      %p41 = por %p39, %p40
      %p42 = scmp.ne.s32.totalorder %s34, %s37
      %p43 = scmp.eq.s32.totalorder %s24, 0
      %p44 = por %p42, %p43
      %p45 = scmp.ne.s32.totalorder %s34, %s37
      %p46 = scmp.eq.s32.totalorder %s29, 1
      %p47 = por %p45, %p46
      %p48 = scmp.ne.s32.totalorder %s37, %s38
      %p49 = scmp.eq.s32.totalorder %s29, 0
      %p50 = por %p48, %p49
      %p51 = scmp.ne.s32.totalorder %s37, %s38
      %p52 = scmp.eq.s32.totalorder %s30, 1
      %p53 = por %p51, %p52
      %p55 = scmp.ne.s32.totalorder %s38, %s54
      %p56 = scmp.eq.s32.totalorder %s30, 0
      %p57 = por %p55, %p56
      %s59 = sadd.s32 %s58, 1
      %p62 = scmp.eq.s32.totalorder %s24, 1
      %p63 = scmp.ne.s32.totalorder %s58, %s60
      %p64 = scmp.eq.s32.totalorder %s24, 0
      %p65 = por %p63, %p64
      %p66 = scmp.ne.s32.totalorder %s58, %s60
      %p67 = scmp.eq.s32.totalorder %s29, 1
      %p68 = por %p66, %p67
      %p69 = scmp.ne.s32.totalorder %s60, %s61
      %p70 = scmp.eq.s32.totalorder %s29, 0
      %p71 = por %p69, %p70
      %p72 = scmp.ne.s32.totalorder %s60, %s61
      %p73 = scmp.eq.s32.totalorder %s30, 1
      %p74 = por %p72, %p73
      %p76 = scmp.ne.s32.totalorder %s61, %s75
      %p77 = scmp.eq.s32.totalorder %s30, 0
      %p78 = por %p76, %p77
      %s80 = sadd.s32 %s79, 1
      %p83 = scmp.eq.s32.totalorder %s24, 1
      %p84 = scmp.ne.s32.totalorder %s79, %s81
      %p85 = scmp.eq.s32.totalorder %s24, 0
      %p86 = por %p84, %p85
      %p87 = scmp.ne.s32.totalorder %s79, %s81
      %p88 = scmp.eq.s32.totalorder %s29, 1
      %p89 = por %p87, %p88
      %p90 = scmp.ne.s32.totalorder %s81, %s82
      %p91 = scmp.eq.s32.totalorder %s29, 0
      %p92 = por %p90, %p91
      %p93 = scmp.ne.s32.totalorder %s81, %s82
      %p94 = scmp.eq.s32.totalorder %s30, 1
      %p95 = por %p93, %p94
      %p97 = scmp.ne.s32.totalorder %s82, %s96
      %p98 = scmp.eq.s32.totalorder %s30, 0
      %p99 = por %p97, %p98
      %s101 = sadd.s32 %s100, 1
      %p104 = scmp.eq.s32.totalorder %s24, 1
      %p105 = scmp.ne.s32.totalorder %s100, %s102
      %p106 = scmp.eq.s32.totalorder %s24, 0
      %p107 = por %p105, %p106
      %p108 = scmp.ne.s32.totalorder %s100, %s102
      %p109 = scmp.eq.s32.totalorder %s29, 1
      %p110 = por %p108, %p109
      %p111 = scmp.ne.s32.totalorder %s102, %s103
      %p112 = scmp.eq.s32.totalorder %s29, 0
      %p113 = por %p111, %p112
      %p114 = scmp.ne.s32.totalorder %s102, %s103
      %p115 = scmp.eq.s32.totalorder %s30, 1
      %p116 = por %p114, %p115
      %p118 = scmp.ne.s32.totalorder %s103, %s117
      %p119 = scmp.eq.s32.totalorder %s30, 0
      %p120 = por %p118, %p119
      %s122 = sadd.s32 %s121, 1
      %p125 = scmp.eq.s32.totalorder %s24, 1
      %p126 = scmp.ne.s32.totalorder %s121, %s123
      %p127 = scmp.eq.s32.totalorder %s24, 0
      %p128 = por %p126, %p127
      %p129 = scmp.ne.s32.totalorder %s121, %s123
      %p130 = scmp.eq.s32.totalorder %s29, 1
      %p131 = por %p129, %p130
      %p132 = scmp.ne.s32.totalorder %s123, %s124
      %p133 = scmp.eq.s32.totalorder %s29, 0
      %p134 = por %p132, %p133
      %p135 = scmp.ne.s32.totalorder %s123, %s124
      %p136 = scmp.eq.s32.totalorder %s30, 1
      %p137 = por %p135, %p136
      %p139 = scmp.ne.s32.totalorder %s124, %s138
      %p140 = scmp.eq.s32.totalorder %s30, 0
      %p141 = por %p139, %p140
      %s142 = ssub.s32 %s24, %s31
      %p143 = scmp.eq.s32.totalorder %s142, 0
      %s145 = sadd.s32 %s144, 1
      %s146 = scalar_select %p143, %s144, %s145
      %p149 = pneg %p143
      %p150 = scmp.eq.s32.totalorder %s24, 1
      %p151 = por %p149, %p150
      %p152 = scmp.ne.s32.totalorder %s144, %s147
      %p153 = scmp.eq.s32.totalorder %s24, 0
      %p154 = por %p152, %p153
      %p155 = scmp.ne.s32.totalorder %s144, %s147
      %p156 = scmp.eq.s32.totalorder %s29, 1
      %p157 = por %p155, %p156
      %p158 = scmp.ne.s32.totalorder %s147, %s148
      %p159 = scmp.eq.s32.totalorder %s29, 0
      %p160 = por %p158, %p159
      %p161 = scmp.ne.s32.totalorder %s147, %s148
      %p162 = scmp.eq.s32.totalorder %s30, 1
      %p163 = por %p161, %p162
      %p165 = scmp.ne.s32.totalorder %s148, %s164
      %p166 = scmp.eq.s32.totalorder %s30, 0
      %p167 = por %p165, %p166
      %s168 = ssub.s32 %s24, %s31
      %p169 = scmp.eq.s32.totalorder %s168, 0
      %s171 = sadd.s32 %s170, 1
      %s172 = scalar_select %p169, %s170, %s171
      %p175 = pneg %p169
      %p176 = scmp.eq.s32.totalorder %s24, 1
      %p177 = por %p175, %p176
      %p178 = scmp.ne.s32.totalorder %s170, %s173
      %p179 = scmp.eq.s32.totalorder %s24, 0
      %p180 = por %p178, %p179
      %p181 = scmp.ne.s32.totalorder %s170, %s173
      %p182 = scmp.eq.s32.totalorder %s29, 1
      %p183 = por %p181, %p182
      %p184 = scmp.ne.s32.totalorder %s173, %s174
      %p185 = scmp.eq.s32.totalorder %s29, 0
      %p186 = por %p184, %p185
      %p187 = scmp.ne.s32.totalorder %s173, %s174
      %p188 = scmp.eq.s32.totalorder %s30, 1
      %p189 = por %p187, %p188
      %p191 = scmp.ne.s32.totalorder %s174, %s190
      %p192 = scmp.eq.s32.totalorder %s30, 0
      %p193 = por %p191, %p192
      %p194 = scmp.le.s32.totalorder 1, %s24
      %p195 = scmp.lt.s32.totalorder %s24, 3
      %p196 = pnand %p194, %p195
      %p197 = pneg %p196
      // Predicated region
      $region9: #{_lambda_.1} parent=5 // pred_check
        _
      $region10: #{_lambda_.1} parent=5 // pred_check_branch
        %199 = sbr.rel (%p196) target = $region12
      $region11: #{_lambda_.1} parent=5 // pred_region
        %s200 = ssub.s32 %s24, 1
        // Predicated region
        $region13: #{_lambda_.1} parent=11 // pred_check
          %p201 = pneg %p71
        $region14: #{_lambda_.1} parent=11 // pred_check_branch
          %203 = sbr.rel (%p201) target = $region16
        $region15: #{_lambda_.1} parent=11 // pred_region
          %s205 = ssub.s32 128, 128
          %206 = vsyncadd [#allocation6], %s205
          %s208 = sshll.u32 [#allocation5], 4
          %s209 = int_to_ptr.vmem [resolvable:$true] %s208
          %211 = dma.hbm_to_vmem [thread:$0]  %s1, 128, %s209, [#allocation6]
        $region16: #{_lambda_.1} parent=11 // pred_fallthru
          _
        // Predicated region
        $region17: #{_lambda_.1} parent=11 // pred_check
          %p212 = pneg %p92
        $region18: #{_lambda_.1} parent=11 // pred_check_branch
          %214 = sbr.rel (%p212) target = $region20
        $region19: #{_lambda_.1} parent=11 // pred_region
          %s216 = ssub.s32 256, 256
          %217 = vsyncadd [#allocation6], %s216
          %s218 = sshll.u32 [#allocation7], 4
          %s219 = int_to_ptr.vmem [resolvable:$true] %s218
          %224 = dma.hbm_to_vmem [thread:$0]  %s2, 256, %s219, [#allocation6], 128, 128, 8
        $region20: #{_lambda_.1} parent=11 // pred_fallthru
          _
        // Predicated region
        $region21: #{_lambda_.1} parent=11 // pred_check
          %p225 = pneg %p113
        $region22: #{_lambda_.1} parent=11 // pred_check_branch
          %227 = sbr.rel (%p225) target = $region24
        $region23: #{_lambda_.1} parent=11 // pred_region
          %s229 = ssub.s32 64, 64
          %230 = vsyncadd [#allocation9], %s229
          %s232 = sshll.u32 [#allocation8], 4
          %s233 = int_to_ptr.vmem [resolvable:$true] %s232
          %235 = dma.hbm_to_vmem [thread:$0]  %s3, 64, %s233, [#allocation9]
        $region24: #{_lambda_.1} parent=11 // pred_fallthru
          _
        // Predicated region
        $region25: #{_lambda_.1} parent=11 // pred_check
          %p236 = pneg %p134
        $region26: #{_lambda_.1} parent=11 // pred_check_branch
          %238 = sbr.rel (%p236) target = $region28
        $region27: #{_lambda_.1} parent=11 // pred_region
          _
        $region28: #{_lambda_.1} parent=11 // pred_fallthru
          _
      $region12: #{_lambda_.1} parent=5 // pred_fallthru
        _
      %p239 = scmp.lt.s32.totalorder %s24, 2
      // Predicated region
      $region29: #{_lambda_.1} parent=5 // pred_check
        %p240 = pneg %p239
      $region30: #{_lambda_.1} parent=5 // pred_check_branch
        %242 = sbr.rel (%p240) target = $region32
      $region31: #{_lambda_.1} parent=5 // pred_region
        // Predicated region
        $region33: #{_lambda_.1} parent=31 // pred_check
          %p243 = pneg %p44
        $region34: #{_lambda_.1} parent=31 // pred_check_branch
          %245 = sbr.rel (%p243) target = $region36
        $region35: #{_lambda_.1} parent=31 // pred_region
          %s246 = sand.u32 %s34, 1
          %s247 = scalar_lea.sflag [#allocation3], %s246
          %s248 = sand.u32 %s34, 1
          %s249 = smul.addr %s248, 64
          %s250 = scalar_lea.vmem [#allocation2], %s249
          %s251 = smul.u32 4, %s24
          %s253 = ssub.s32 1024, 1024
          %254 = vsyncadd %s247, %s253
          %s255 = smul.addr %s251, 2
          %s256 = smul.addr %s255, 128
          %s257 = scalar_lea.hbm %s0, %s256
          %s258 = sshll.u32 %s250, 4
          %s259 = int_to_ptr.vmem [resolvable:$true] %s258
          %264 = dma.hbm_to_vmem [thread:$0]  %s257, 1024, %s259, %s247, 128, 128, 8
        $region36: #{_lambda_.1} parent=31 // pred_fallthru
          _
      $region32: #{_lambda_.1} parent=5 // pred_fallthru
        _
      %p265 = scmp.le.s32.totalorder 1, %s24
      %p266 = scmp.lt.s32.totalorder %s24, 3
      %p267 = pnand %p265, %p266
      %p268 = pneg %p267
      // Predicated region
      $region37: #{_lambda_.1} parent=5 // pred_check
        _
      $region38: #{_lambda_.1} parent=5 // pred_check_branch
        %270 = sbr.rel (%p267) target = $region40
      $region39: #{_lambda_.1} parent=5 // pred_region
        %s271 = ssub.s32 %s24, 1
        %s272 = sand.u32 %s37, 1
        %s273 = scalar_lea.sflag [#allocation3], %s272
        %s274 = sand.u32 %s37, 1
        %s275 = smul.addr %s274, 64
        %s276 = scalar_lea.vmem [#allocation2], %s275
        // Predicated region
        $region41: #{_lambda_.1} parent=39 // pred_check
          %p277 = pneg %p50
        $region42: #{_lambda_.1} parent=39 // pred_check_branch
          %279 = sbr.rel (%p277) target = $region44
        $region43: #{_lambda_.1} parent=39 // pred_region
          %280 = dma.done %s273, 1024
        $region44: #{_lambda_.1} parent=39 // pred_fallthru
          _
        // Predicated region
        $region45: #{_lambda_.1} parent=39 // pred_check
          %p281 = pneg %p71
        $region46: #{_lambda_.1} parent=39 // pred_check_branch
          %283 = sbr.rel (%p281) target = $region48
        $region47: #{_lambda_.1} parent=39 // pred_region
          %284 = dma.done [#allocation6], 128
        $region48: #{_lambda_.1} parent=39 // pred_fallthru
          _
        // Predicated region
        $region49: #{_lambda_.1} parent=39 // pred_check
          %p285 = pneg %p92
        $region50: #{_lambda_.1} parent=39 // pred_check_branch
          %287 = sbr.rel (%p285) target = $region52
        $region51: #{_lambda_.1} parent=39 // pred_region
          %288 = dma.done [#allocation6], 256
        $region52: #{_lambda_.1} parent=39 // pred_fallthru
          _
        // Predicated region
        $region53: #{_lambda_.1} parent=39 // pred_check
          %p289 = pneg %p113
        $region54: #{_lambda_.1} parent=39 // pred_check_branch
          %291 = sbr.rel (%p289) target = $region56
        $region55: #{_lambda_.1} parent=39 // pred_region
          %292 = dma.done [#allocation9], 64
        $region56: #{_lambda_.1} parent=39 // pred_fallthru
          _
        %s293 = sand.u32 %s37, 1
        %s294 = scalar_lea.sflag [#allocation3], %s293
        %s295 = sand.u32 %s37, 1
        %s296 = smul.addr %s295, 64
        %s297 = scalar_lea.vmem [#allocation2], %s296
        %p298 = pneg %p50
        %p299 = pneg %p47
        %p300 = pneg %p71
        %p301 = pneg %p68
        %p302 = pneg %p92
        %p303 = pneg %p89
        %p304 = pneg %p113
        %p305 = pneg %p110
        %p306 = pneg %p134
        %p307 = pneg %p131
        %p308 = pneg %p160
        %p309 = pneg %p157
        %s310 = sand.u32 %s147, 1
        %s311 = scalar_lea.sflag [#allocation4], %s310
        %s312 = sand.u32 %s147, 1
        %s313 = smul.addr %s312, 32
        %s314 = scalar_lea.vmem [#allocation10], %s313
        %p315 = pneg %p186
        %p316 = pneg %p183
        %s317 = sand.u32 %s173, 1
        %s318 = scalar_lea.sflag [#allocation12], %s317
        %s319 = sand.u32 %s173, 1
        %s320 = smul.addr %s319, 16
        %s321 = scalar_lea.vmem [#allocation11], %s320
        %s322 = smul.u32 4, %s29
        %s323 = smul.u32 4, %s29
        %s324 = smul.u32 4, %s29
        %v325 = vld [vmem:[%s276] sm:$0xff]
        %v326 = vld [vmem:[%s276 + $0x8] sm:$0xff]
        %v327 = vld [vmem:[%s276 + $0x10] sm:$0xff]
        %v328 = vld [vmem:[%s276 + $0x18] sm:$0xff]
        %v329 = vld [vmem:[%s276 + $0x20] sm:$0xff]
        %v330 = vld [vmem:[%s276 + $0x28] sm:$0xff]
        %v331 = vld [vmem:[%s276 + $0x30] sm:$0xff]
        %v332 = vld [vmem:[%s276 + $0x38] sm:$0xff]
        %v333 = vld [vmem:[#allocation5] sm:$0xff]
        %v334 = vld [vmem:[#allocation7] sm:$0xff]
        %v335 = vld [vmem:[#allocation7 + $0x8] sm:$0xff]
        %vm336 = vcmask 130048
        %v338 = vsel %vm336, %v325, 0
        %v341 = vsel %vm336, %v326, 0
        %v344 = vsel %vm336, %v327, 0
        %v347 = vsel %vm336, %v328, 0
        %v350 = vsel %vm336, %v329, 0
        %v353 = vsel %vm336, %v330, 0
        %v356 = vsel %vm336, %v331, 0
        %v359 = vsel %vm336, %v332, 0
        %361 = vmatprep.subr.mxu0 0.0
        %362 = vmatpush1.msra.mxu0 %v334
        %363 = vmatprep.subr.mxu0 0.0
        %364 = vmatpush1.msra.mxu0 %v335
        %365 = vmatprep.subr.mxu0 0.0
        %366 = vmatpush1.msra.mxu0 0.0
        %367 = vmatprep.subr.mxu0 0.0
        %368 = vmatpush1.msra.mxu0 0.0
        %369 = vmatprep.subr.mxu0 0.0
        %370 = vmatpush1.msra.mxu0 0.0
        %371 = vmatprep.subr.mxu0 0.0
        %372 = vmatpush1.msra.mxu0 0.0
        %373 = vmatprep.subr.mxu0 0.0
        %374 = vmatpush1.msra.mxu0 0.0
        %375 = vmatprep.subr.mxu0 0.0
        %376 = vmatpush1.msra.mxu0 0.0
        %377 = vmatprep.subr.mxu0 0.0
        %378 = vmatpush1.msra.mxu0 0.0
        %379 = vmatprep.subr.mxu0 0.0
        %380 = vmatpush1.msra.mxu0 0.0
        %381 = vmatprep.subr.mxu0 0.0
        %382 = vmatpush1.msra.mxu0 0.0
        %383 = vmatprep.subr.mxu0 0.0
        %384 = vmatpush1.msra.mxu0 0.0
        %385 = vmatprep.subr.mxu0 0.0
        %386 = vmatpush1.msra.mxu0 0.0
        %387 = vmatprep.subr.mxu0 0.0
        %388 = vmatpush1.msra.mxu0 0.0
        %389 = vmatprep.subr.mxu0 0.0
        %390 = vmatpush1.msra.mxu0 0.0
        %391 = vmatprep.subr.mxu0 0.0
        %392 = vmatpush1.msra.mxu0 0.0
        %393 = vmatprep.subr.mxu0 0.0
        %394 = vmatpush1.msra.mxu0 0.0
        %395 = vmatprep.subr.mxu0 0.0
        %396 = vmatpush1.msra.mxu0 0.0
        %397 = vmatprep.subr.mxu0 0.0
        %398 = vmatpush1.msra.mxu0 0.0
        %399 = vmatprep.subr.mxu0 0.0
        %400 = vmatpush1.msra.mxu0 0.0
        %401 = vmatprep.subr.mxu0 0.0
        %402 = vmatpush1.msra.mxu0 0.0
        %403 = vmatprep.subr.mxu0 0.0
        %404 = vmatpush1.msra.mxu0 0.0
        %405 = vmatprep.subr.mxu0 0.0
        %406 = vmatpush1.msra.mxu0 0.0
        %407 = vmatprep.subr.mxu0 0.0
        %408 = vmatpush1.msra.mxu0 0.0
        %409 = vmatprep.subr.mxu0 0.0
        %410 = vmatpush1.msra.mxu0 0.0
        %411 = vmatprep.subr.mxu0 0.0
        %412 = vmatpush1.msra.mxu0 0.0
        %413 = vmatprep.subr.mxu0 0.0
        %414 = vmatpush1.msra.mxu0 0.0
        %415 = vmatprep.subr.mxu0 0.0
        %416 = vmatpush1.msra.mxu0 0.0
        %417 = vmatprep.subr.mxu0 0.0
        %418 = vmatpush1.msra.mxu0 0.0
        %419 = vmatprep.subr.mxu0 0.0
        %420 = vmatpush1.msra.mxu0 0.0
        %421 = vmatprep.subr.mxu0 0.0
        %422 = vmatpush1.msra.mxu0 0.0
        %423 = vmatprep.subr.mxu0 0.0
        %424 = vmatpush1.msra.mxu0 0.0
        %425 = vmatprep.mubr.f32.mxu0 0.0
        %426 = vmatmul.mubr.f32.gmra.mrb[0].mxu0 %v338
        %v427 = vpop.f32.mrb[0].mxu0
        %v428 = vadd.f32 0.0, %v427
        %v429 = vpop.f32.mrb[0].mxu0
        %430 = vmatprep.mubr.f32.mxu0 0.0
        %431 = vmatmul.mubr.f32.gmra.mrb[0].mxu0 %v341
        %v432 = vpop.f32.mrb[0].mxu0
        %v433 = vadd.f32 0.0, %v432
        %v434 = vpop.f32.mrb[0].mxu0
        %435 = vmatprep.mubr.f32.mxu0 0.0
        %436 = vmatmul.mubr.f32.gmra.mrb[0].mxu0 %v344
        %v437 = vpop.f32.mrb[0].mxu0
        %v438 = vadd.f32 0.0, %v437
        %v439 = vpop.f32.mrb[0].mxu0
        %440 = vmatprep.mubr.f32.mxu0 0.0
        %441 = vmatmul.mubr.f32.gmra.mrb[0].mxu0 %v347
        %v442 = vpop.f32.mrb[0].mxu0
        %v443 = vadd.f32 0.0, %v442
        %v444 = vpop.f32.mrb[0].mxu0
        %445 = vmatprep.mubr.f32.mxu0 0.0
        %446 = vmatmul.mubr.f32.gmra.mrb[0].mxu0 %v350
        %v447 = vpop.f32.mrb[0].mxu0
        %v448 = vadd.f32 0.0, %v447
        %v449 = vpop.f32.mrb[0].mxu0
        %450 = vmatprep.mubr.f32.mxu0 0.0
        %451 = vmatmul.mubr.f32.gmra.mrb[0].mxu0 %v353
        %v452 = vpop.f32.mrb[0].mxu0
        %v453 = vadd.f32 0.0, %v452
        %v454 = vpop.f32.mrb[0].mxu0
        %455 = vmatprep.mubr.f32.mxu0 0.0
        %456 = vmatmul.mubr.f32.gmra.mrb[0].mxu0 %v356
        %v457 = vpop.f32.mrb[0].mxu0
        %v458 = vadd.f32 0.0, %v457
        %v459 = vpop.f32.mrb[0].mxu0
        %460 = vmatprep.mubr.f32.mxu0 0.0
        %461 = vmatmul.mubr.f32.gmra.mrb[0].mxu0 %v359
        %v462 = vpop.f32.mrb[0].mxu0
        %v463 = vadd.f32 0.0, %v462
        %v464 = vpop.f32.mrb[0].mxu0
        %465 = vdwg.mxu0
        %v467 = vsel %vm336, %v333, 0
        %469 = vmatprep.subr.mxu0 0.0
        %470 = vmatpush1.msra.mxu0 %v428
        %471 = vmatprep.subr.mxu0 0.0
        %472 = vmatpush1.msra.mxu0 %v433
        %473 = vmatprep.subr.mxu0 0.0
        %474 = vmatpush1.msra.mxu0 0.0
        %475 = vmatprep.subr.mxu0 0.0
        %476 = vmatpush1.msra.mxu0 0.0
        %477 = vmatprep.subr.mxu0 0.0
        %478 = vmatpush1.msra.mxu0 0.0
        %479 = vmatprep.subr.mxu0 0.0
        %480 = vmatpush1.msra.mxu0 0.0
        %481 = vmatprep.subr.mxu0 0.0
        %482 = vmatpush1.msra.mxu0 0.0
        %483 = vmatprep.subr.mxu0 0.0
        %484 = vmatpush1.msra.mxu0 0.0
        %485 = vmatprep.subr.mxu0 0.0
        %486 = vmatpush1.msra.mxu0 0.0
        %487 = vmatprep.subr.mxu0 0.0
        %488 = vmatpush1.msra.mxu0 0.0
        %489 = vmatprep.subr.mxu0 0.0
        %490 = vmatpush1.msra.mxu0 0.0
        %491 = vmatprep.subr.mxu0 0.0
        %492 = vmatpush1.msra.mxu0 0.0
        %493 = vmatprep.subr.mxu0 0.0
        %494 = vmatpush1.msra.mxu0 0.0
        %495 = vmatprep.subr.mxu0 0.0
        %496 = vmatpush1.msra.mxu0 0.0
        %497 = vmatprep.subr.mxu0 0.0
        %498 = vmatpush1.msra.mxu0 0.0
        %499 = vmatprep.subr.mxu0 0.0
        %500 = vmatpush1.msra.mxu0 0.0
        %501 = vmatprep.subr.mxu0 0.0
        %502 = vmatpush1.msra.mxu0 0.0
        %503 = vmatprep.subr.mxu0 0.0
        %504 = vmatpush1.msra.mxu0 0.0
        %505 = vmatprep.subr.mxu0 0.0
        %506 = vmatpush1.msra.mxu0 0.0
        %507 = vmatprep.subr.mxu0 0.0
        %508 = vmatpush1.msra.mxu0 0.0
        %509 = vmatprep.subr.mxu0 0.0
        %510 = vmatpush1.msra.mxu0 0.0
        %511 = vmatprep.subr.mxu0 0.0
        %512 = vmatpush1.msra.mxu0 0.0
        %513 = vmatprep.subr.mxu0 0.0
        %514 = vmatpush1.msra.mxu0 0.0
        %515 = vmatprep.subr.mxu0 0.0
        %516 = vmatpush1.msra.mxu0 0.0
        %517 = vmatprep.subr.mxu0 0.0
        %518 = vmatpush1.msra.mxu0 0.0
        %519 = vmatprep.subr.mxu0 0.0
        %520 = vmatpush1.msra.mxu0 0.0
        %521 = vmatprep.subr.mxu0 0.0
        %522 = vmatpush1.msra.mxu0 0.0
        %523 = vmatprep.subr.mxu0 0.0
        %524 = vmatpush1.msra.mxu0 0.0
        %525 = vmatprep.subr.mxu0 0.0
        %526 = vmatpush1.msra.mxu0 0.0
        %527 = vmatprep.subr.mxu0 0.0
        %528 = vmatpush1.msra.mxu0 0.0
        %529 = vmatprep.subr.mxu0 0.0
        %530 = vmatpush1.msra.mxu0 0.0
        %531 = vmatprep.subr.mxu0 0.0
        %532 = vmatpush1.msra.mxu0 0.0
        %533 = vmatprep.mubr.f32.mxu0 0.0
        %534 = vmatmul.mubr.f32.gmra.mrb[0].mxu0 %v467
        %v535 = vpop.f32.mrb[0].mxu0
        %v536 = vadd.f32 0.0, %v535
        %v537 = vpop.f32.mrb[0].mxu0
        %538 = vdwg.mxu0
        %539 = vmatprep.subr.mxu0 0.0
        %540 = vmatpush1.msra.mxu0 %v438
        %541 = vmatprep.subr.mxu0 0.0
        %542 = vmatpush1.msra.mxu0 %v443
        %543 = vmatprep.subr.mxu0 0.0
        %544 = vmatpush1.msra.mxu0 0.0
        %545 = vmatprep.subr.mxu0 0.0
        %546 = vmatpush1.msra.mxu0 0.0
        %547 = vmatprep.subr.mxu0 0.0
        %548 = vmatpush1.msra.mxu0 0.0
        %549 = vmatprep.subr.mxu0 0.0
        %550 = vmatpush1.msra.mxu0 0.0
        %551 = vmatprep.subr.mxu0 0.0
        %552 = vmatpush1.msra.mxu0 0.0
        %553 = vmatprep.subr.mxu0 0.0
        %554 = vmatpush1.msra.mxu0 0.0
        %555 = vmatprep.subr.mxu0 0.0
        %556 = vmatpush1.msra.mxu0 0.0
        %557 = vmatprep.subr.mxu0 0.0
        %558 = vmatpush1.msra.mxu0 0.0
        %559 = vmatprep.subr.mxu0 0.0
        %560 = vmatpush1.msra.mxu0 0.0
        %561 = vmatprep.subr.mxu0 0.0
        %562 = vmatpush1.msra.mxu0 0.0
        %563 = vmatprep.subr.mxu0 0.0
        %564 = vmatpush1.msra.mxu0 0.0
        %565 = vmatprep.subr.mxu0 0.0
        %566 = vmatpush1.msra.mxu0 0.0
        %567 = vmatprep.subr.mxu0 0.0
        %568 = vmatpush1.msra.mxu0 0.0
        %569 = vmatprep.subr.mxu0 0.0
        %570 = vmatpush1.msra.mxu0 0.0
        %571 = vmatprep.subr.mxu0 0.0
        %572 = vmatpush1.msra.mxu0 0.0
        %573 = vmatprep.subr.mxu0 0.0
        %574 = vmatpush1.msra.mxu0 0.0
        %575 = vmatprep.subr.mxu0 0.0
        %576 = vmatpush1.msra.mxu0 0.0
        %577 = vmatprep.subr.mxu0 0.0
        %578 = vmatpush1.msra.mxu0 0.0
        %579 = vmatprep.subr.mxu0 0.0
        %580 = vmatpush1.msra.mxu0 0.0
        %581 = vmatprep.subr.mxu0 0.0
        %582 = vmatpush1.msra.mxu0 0.0
        %583 = vmatprep.subr.mxu0 0.0
        %584 = vmatpush1.msra.mxu0 0.0
        %585 = vmatprep.subr.mxu0 0.0
        %586 = vmatpush1.msra.mxu0 0.0
        %587 = vmatprep.subr.mxu0 0.0
        %588 = vmatpush1.msra.mxu0 0.0
        %589 = vmatprep.subr.mxu0 0.0
        %590 = vmatpush1.msra.mxu0 0.0
        %591 = vmatprep.subr.mxu0 0.0
        %592 = vmatpush1.msra.mxu0 0.0
        %593 = vmatprep.subr.mxu0 0.0
        %594 = vmatpush1.msra.mxu0 0.0
        %595 = vmatprep.subr.mxu0 0.0
        %596 = vmatpush1.msra.mxu0 0.0
        %597 = vmatprep.subr.mxu0 0.0
        %598 = vmatpush1.msra.mxu0 0.0
        %599 = vmatprep.subr.mxu0 0.0
        %600 = vmatpush1.msra.mxu0 0.0
        %601 = vmatprep.subr.mxu0 0.0
        %602 = vmatpush1.msra.mxu0 0.0
        %603 = vmatprep.mubr.f32.mxu0 0.0
        %604 = vmatmul.mubr.f32.gmra.mrb[0].mxu0 %v467
        %v605 = vpop.f32.mrb[0].mxu0
        %v606 = vadd.f32 0.0, %v605
        %v607 = vpop.f32.mrb[0].mxu0
        %608 = vdwg.mxu0
        %609 = vmatprep.subr.mxu0 0.0
        %610 = vmatpush1.msra.mxu0 %v448
        %611 = vmatprep.subr.mxu0 0.0
        %612 = vmatpush1.msra.mxu0 %v453
        %613 = vmatprep.subr.mxu0 0.0
        %614 = vmatpush1.msra.mxu0 0.0
        %615 = vmatprep.subr.mxu0 0.0
        %616 = vmatpush1.msra.mxu0 0.0
        %617 = vmatprep.subr.mxu0 0.0
        %618 = vmatpush1.msra.mxu0 0.0
        %619 = vmatprep.subr.mxu0 0.0
        %620 = vmatpush1.msra.mxu0 0.0
        %621 = vmatprep.subr.mxu0 0.0
        %622 = vmatpush1.msra.mxu0 0.0
        %623 = vmatprep.subr.mxu0 0.0
        %624 = vmatpush1.msra.mxu0 0.0
        %625 = vmatprep.subr.mxu0 0.0
        %626 = vmatpush1.msra.mxu0 0.0
        %627 = vmatprep.subr.mxu0 0.0
        %628 = vmatpush1.msra.mxu0 0.0
        %629 = vmatprep.subr.mxu0 0.0
        %630 = vmatpush1.msra.mxu0 0.0
        %631 = vmatprep.subr.mxu0 0.0
        %632 = vmatpush1.msra.mxu0 0.0
        %633 = vmatprep.subr.mxu0 0.0
        %634 = vmatpush1.msra.mxu0 0.0
        %635 = vmatprep.subr.mxu0 0.0
        %636 = vmatpush1.msra.mxu0 0.0
        %637 = vmatprep.subr.mxu0 0.0
        %638 = vmatpush1.msra.mxu0 0.0
        %639 = vmatprep.subr.mxu0 0.0
        %640 = vmatpush1.msra.mxu0 0.0
        %641 = vmatprep.subr.mxu0 0.0
        %642 = vmatpush1.msra.mxu0 0.0
        %643 = vmatprep.subr.mxu0 0.0
        %644 = vmatpush1.msra.mxu0 0.0
        %645 = vmatprep.subr.mxu0 0.0
        %646 = vmatpush1.msra.mxu0 0.0
        %647 = vmatprep.subr.mxu0 0.0
        %648 = vmatpush1.msra.mxu0 0.0
        %649 = vmatprep.subr.mxu0 0.0
        %650 = vmatpush1.msra.mxu0 0.0
        %651 = vmatprep.subr.mxu0 0.0
        %652 = vmatpush1.msra.mxu0 0.0
        %653 = vmatprep.subr.mxu0 0.0
        %654 = vmatpush1.msra.mxu0 0.0
        %655 = vmatprep.subr.mxu0 0.0
        %656 = vmatpush1.msra.mxu0 0.0
        %657 = vmatprep.subr.mxu0 0.0
        %658 = vmatpush1.msra.mxu0 0.0
        %659 = vmatprep.subr.mxu0 0.0
        %660 = vmatpush1.msra.mxu0 0.0
        %661 = vmatprep.subr.mxu0 0.0
        %662 = vmatpush1.msra.mxu0 0.0
        %663 = vmatprep.subr.mxu0 0.0
        %664 = vmatpush1.msra.mxu0 0.0
        %665 = vmatprep.subr.mxu0 0.0
        %666 = vmatpush1.msra.mxu0 0.0
        %667 = vmatprep.subr.mxu0 0.0
        %668 = vmatpush1.msra.mxu0 0.0
        %669 = vmatprep.subr.mxu0 0.0
        %670 = vmatpush1.msra.mxu0 0.0
        %671 = vmatprep.subr.mxu0 0.0
        %672 = vmatpush1.msra.mxu0 0.0
        %673 = vmatprep.mubr.f32.mxu0 0.0
        %674 = vmatmul.mubr.f32.gmra.mrb[0].mxu0 %v467
        %v675 = vpop.f32.mrb[0].mxu0
        %v676 = vadd.f32 0.0, %v675
        %v677 = vpop.f32.mrb[0].mxu0
        %678 = vdwg.mxu0
        %679 = vmatprep.subr.mxu0 0.0
        %680 = vmatpush1.msra.mxu0 %v458
        %681 = vmatprep.subr.mxu0 0.0
        %682 = vmatpush1.msra.mxu0 %v463
        %683 = vmatprep.subr.mxu0 0.0
        %684 = vmatpush1.msra.mxu0 0.0
        %685 = vmatprep.subr.mxu0 0.0
        %686 = vmatpush1.msra.mxu0 0.0
        %687 = vmatprep.subr.mxu0 0.0
        %688 = vmatpush1.msra.mxu0 0.0
        %689 = vmatprep.subr.mxu0 0.0
        %690 = vmatpush1.msra.mxu0 0.0
        %691 = vmatprep.subr.mxu0 0.0
        %692 = vmatpush1.msra.mxu0 0.0
        %693 = vmatprep.subr.mxu0 0.0
        %694 = vmatpush1.msra.mxu0 0.0
        %695 = vmatprep.subr.mxu0 0.0
        %696 = vmatpush1.msra.mxu0 0.0
        %697 = vmatprep.subr.mxu0 0.0
        %698 = vmatpush1.msra.mxu0 0.0
        %699 = vmatprep.subr.mxu0 0.0
        %700 = vmatpush1.msra.mxu0 0.0
        %701 = vmatprep.subr.mxu0 0.0
        %702 = vmatpush1.msra.mxu0 0.0
        %703 = vmatprep.subr.mxu0 0.0
        %704 = vmatpush1.msra.mxu0 0.0
        %705 = vmatprep.subr.mxu0 0.0
        %706 = vmatpush1.msra.mxu0 0.0
        %707 = vmatprep.subr.mxu0 0.0
        %708 = vmatpush1.msra.mxu0 0.0
        %709 = vmatprep.subr.mxu0 0.0
        %710 = vmatpush1.msra.mxu0 0.0
        %711 = vmatprep.subr.mxu0 0.0
        %712 = vmatpush1.msra.mxu0 0.0
        %713 = vmatprep.subr.mxu0 0.0
        %714 = vmatpush1.msra.mxu0 0.0
        %715 = vmatprep.subr.mxu0 0.0
        %716 = vmatpush1.msra.mxu0 0.0
        %717 = vmatprep.subr.mxu0 0.0
        %718 = vmatpush1.msra.mxu0 0.0
        %719 = vmatprep.subr.mxu0 0.0
        %720 = vmatpush1.msra.mxu0 0.0
        %721 = vmatprep.subr.mxu0 0.0
        %722 = vmatpush1.msra.mxu0 0.0
        %723 = vmatprep.subr.mxu0 0.0
        %724 = vmatpush1.msra.mxu0 0.0
        %725 = vmatprep.subr.mxu0 0.0
        %726 = vmatpush1.msra.mxu0 0.0
        %727 = vmatprep.subr.mxu0 0.0
        %728 = vmatpush1.msra.mxu0 0.0
        %729 = vmatprep.subr.mxu0 0.0
        %730 = vmatpush1.msra.mxu0 0.0
        %731 = vmatprep.subr.mxu0 0.0
        %732 = vmatpush1.msra.mxu0 0.0
        %733 = vmatprep.subr.mxu0 0.0
        %734 = vmatpush1.msra.mxu0 0.0
        %735 = vmatprep.subr.mxu0 0.0
        %736 = vmatpush1.msra.mxu0 0.0
        %737 = vmatprep.subr.mxu0 0.0
        %738 = vmatpush1.msra.mxu0 0.0
        %739 = vmatprep.subr.mxu0 0.0
        %740 = vmatpush1.msra.mxu0 0.0
        %741 = vmatprep.subr.mxu0 0.0
        %742 = vmatpush1.msra.mxu0 0.0
        %743 = vmatprep.mubr.f32.mxu0 0.0
        %744 = vmatmul.mubr.f32.gmra.mrb[0].mxu0 %v467
        %v745 = vpop.f32.mrb[0].mxu0
        %v746 = vadd.f32 0.0, %v745
        %v747 = vpop.f32.mrb[0].mxu0
        %748 = vdwg.mxu0
        %vm749 = vcmask 64512
        %750 = vst.msk [vmem:[%s314] sm:$0xff] %vm749, %v536
        %751 = vst.msk [vmem:[%s314 + $0x8] sm:$0xff] %vm749, %v606
        %752 = vst.msk [vmem:[%s314 + $0x10] sm:$0xff] %vm749, %v676
        %753 = vst.msk [vmem:[%s314 + $0x18] sm:$0xff] %vm749, %v746
        %v754 = vld [vmem:[#allocation8] sm:$0xf]
        %v755 = vld [vmem:[%s4] sm:$0xff]
        %v756 = vld [vmem:[%s4 + $0x8] sm:$0xff]
        %757 = vmatprep.subr.mxu0 0.0
        %758 = vmatpush1.msra.mxu0 %v755
        %759 = vmatprep.subr.mxu0 0.0
        %760 = vmatpush1.msra.mxu0 %v756
        %761 = vmatprep.subr.mxu0 0.0
        %762 = vmatpush1.msra.mxu0 0.0
        %763 = vmatprep.subr.mxu0 0.0
        %764 = vmatpush1.msra.mxu0 0.0
        %765 = vmatprep.subr.mxu0 0.0
        %766 = vmatpush1.msra.mxu0 0.0
        %767 = vmatprep.subr.mxu0 0.0
        %768 = vmatpush1.msra.mxu0 0.0
        %769 = vmatprep.subr.mxu0 0.0
        %770 = vmatpush1.msra.mxu0 0.0
        %771 = vmatprep.subr.mxu0 0.0
        %772 = vmatpush1.msra.mxu0 0.0
        %773 = vmatprep.subr.mxu0 0.0
        %774 = vmatpush1.msra.mxu0 0.0
        %775 = vmatprep.subr.mxu0 0.0
        %776 = vmatpush1.msra.mxu0 0.0
        %777 = vmatprep.subr.mxu0 0.0
        %778 = vmatpush1.msra.mxu0 0.0
        %779 = vmatprep.subr.mxu0 0.0
        %780 = vmatpush1.msra.mxu0 0.0
        %781 = vmatprep.subr.mxu0 0.0
        %782 = vmatpush1.msra.mxu0 0.0
        %783 = vmatprep.subr.mxu0 0.0
        %784 = vmatpush1.msra.mxu0 0.0
        %785 = vmatprep.subr.mxu0 0.0
        %786 = vmatpush1.msra.mxu0 0.0
        %787 = vmatprep.subr.mxu0 0.0
        %788 = vmatpush1.msra.mxu0 0.0
        %789 = vmatprep.subr.mxu0 0.0
        %790 = vmatpush1.msra.mxu0 0.0
        %791 = vmatprep.subr.mxu0 0.0
        %792 = vmatpush1.msra.mxu0 0.0
        %793 = vmatprep.subr.mxu0 0.0
        %794 = vmatpush1.msra.mxu0 0.0
        %795 = vmatprep.subr.mxu0 0.0
        %796 = vmatpush1.msra.mxu0 0.0
        %797 = vmatprep.subr.mxu0 0.0
        %798 = vmatpush1.msra.mxu0 0.0
        %799 = vmatprep.subr.mxu0 0.0
        %800 = vmatpush1.msra.mxu0 0.0
        %801 = vmatprep.subr.mxu0 0.0
        %802 = vmatpush1.msra.mxu0 0.0
        %803 = vmatprep.subr.mxu0 0.0
        %804 = vmatpush1.msra.mxu0 0.0
        %805 = vmatprep.subr.mxu0 0.0
        %806 = vmatpush1.msra.mxu0 0.0
        %807 = vmatprep.subr.mxu0 0.0
        %808 = vmatpush1.msra.mxu0 0.0
        %809 = vmatprep.subr.mxu0 0.0
        %810 = vmatpush1.msra.mxu0 0.0
        %811 = vmatprep.subr.mxu0 0.0
        %812 = vmatpush1.msra.mxu0 0.0
        %813 = vmatprep.subr.mxu0 0.0
        %814 = vmatpush1.msra.mxu0 0.0
        %815 = vmatprep.subr.mxu0 0.0
        %816 = vmatpush1.msra.mxu0 0.0
        %817 = vmatprep.subr.mxu0 0.0
        %818 = vmatpush1.msra.mxu0 0.0
        %819 = vmatprep.subr.mxu0 0.0
        %820 = vmatpush1.msra.mxu0 0.0
        %821 = vmatprep.mubr.f32.mxu0 0.0
        %822 = vmatmul.mubr.f32.gmra.mrb[0].mxu0 %v338
        %v823 = vpop.f32.mrb[0].mxu0
        %v824 = vadd.f32 0.0, %v823
        %v825 = vpop.f32.mrb[0].mxu0
        %826 = vmatprep.mubr.f32.mxu0 0.0
        %827 = vmatmul.mubr.f32.gmra.mrb[0].mxu0 %v341
        %v828 = vpop.f32.mrb[0].mxu0
        %v829 = vadd.f32 0.0, %v828
        %v830 = vpop.f32.mrb[0].mxu0
        %831 = vmatprep.mubr.f32.mxu0 0.0
        %832 = vmatmul.mubr.f32.gmra.mrb[0].mxu0 %v344
        %v833 = vpop.f32.mrb[0].mxu0
        %v834 = vadd.f32 0.0, %v833
        %v835 = vpop.f32.mrb[0].mxu0
        %836 = vmatprep.mubr.f32.mxu0 0.0
        %837 = vmatmul.mubr.f32.gmra.mrb[0].mxu0 %v347
        %v838 = vpop.f32.mrb[0].mxu0
        %v839 = vadd.f32 0.0, %v838
        %v840 = vpop.f32.mrb[0].mxu0
        %841 = vmatprep.mubr.f32.mxu0 0.0
        %842 = vmatmul.mubr.f32.gmra.mrb[0].mxu0 %v350
        %v843 = vpop.f32.mrb[0].mxu0
        %v844 = vadd.f32 0.0, %v843
        %v845 = vpop.f32.mrb[0].mxu0
        %846 = vmatprep.mubr.f32.mxu0 0.0
        %847 = vmatmul.mubr.f32.gmra.mrb[0].mxu0 %v353
        %v848 = vpop.f32.mrb[0].mxu0
        %v849 = vadd.f32 0.0, %v848
        %v850 = vpop.f32.mrb[0].mxu0
        %851 = vmatprep.mubr.f32.mxu0 0.0
        %852 = vmatmul.mubr.f32.gmra.mrb[0].mxu0 %v356
        %v853 = vpop.f32.mrb[0].mxu0
        %v854 = vadd.f32 0.0, %v853
        %v855 = vpop.f32.mrb[0].mxu0
        %856 = vmatprep.mubr.f32.mxu0 0.0
        %857 = vmatmul.mubr.f32.gmra.mrb[0].mxu0 %v359
        %v858 = vpop.f32.mrb[0].mxu0
        %v859 = vadd.f32 0.0, %v858
        %v860 = vpop.f32.mrb[0].mxu0
        %861 = vdwg.mxu0
        %v863 = vsel %vm336, %v754, 0
        %865 = vmatprep.subr.mxu0 0.0
        %866 = vmatpush1.msra.mxu0 %v824
        %867 = vmatprep.subr.mxu0 0.0
        %868 = vmatpush1.msra.mxu0 %v829
        %869 = vmatprep.subr.mxu0 0.0
        %870 = vmatpush1.msra.mxu0 0.0
        %871 = vmatprep.subr.mxu0 0.0
        %872 = vmatpush1.msra.mxu0 0.0
        %873 = vmatprep.subr.mxu0 0.0
        %874 = vmatpush1.msra.mxu0 0.0
        %875 = vmatprep.subr.mxu0 0.0
        %876 = vmatpush1.msra.mxu0 0.0
        %877 = vmatprep.subr.mxu0 0.0
        %878 = vmatpush1.msra.mxu0 0.0
        %879 = vmatprep.subr.mxu0 0.0
        %880 = vmatpush1.msra.mxu0 0.0
        %881 = vmatprep.subr.mxu0 0.0
        %882 = vmatpush1.msra.mxu0 0.0
        %883 = vmatprep.subr.mxu0 0.0
        %884 = vmatpush1.msra.mxu0 0.0
        %885 = vmatprep.subr.mxu0 0.0
        %886 = vmatpush1.msra.mxu0 0.0
        %887 = vmatprep.subr.mxu0 0.0
        %888 = vmatpush1.msra.mxu0 0.0
        %889 = vmatprep.subr.mxu0 0.0
        %890 = vmatpush1.msra.mxu0 0.0
        %891 = vmatprep.subr.mxu0 0.0
        %892 = vmatpush1.msra.mxu0 0.0
        %893 = vmatprep.subr.mxu0 0.0
        %894 = vmatpush1.msra.mxu0 0.0
        %895 = vmatprep.subr.mxu0 0.0
        %896 = vmatpush1.msra.mxu0 0.0
        %897 = vmatprep.subr.mxu0 0.0
        %898 = vmatpush1.msra.mxu0 0.0
        %899 = vmatprep.subr.mxu0 0.0
        %900 = vmatpush1.msra.mxu0 0.0
        %901 = vmatprep.subr.mxu0 0.0
        %902 = vmatpush1.msra.mxu0 0.0
        %903 = vmatprep.subr.mxu0 0.0
        %904 = vmatpush1.msra.mxu0 0.0
        %905 = vmatprep.subr.mxu0 0.0
        %906 = vmatpush1.msra.mxu0 0.0
        %907 = vmatprep.subr.mxu0 0.0
        %908 = vmatpush1.msra.mxu0 0.0
        %909 = vmatprep.subr.mxu0 0.0
        %910 = vmatpush1.msra.mxu0 0.0
        %911 = vmatprep.subr.mxu0 0.0
        %912 = vmatpush1.msra.mxu0 0.0
        %913 = vmatprep.subr.mxu0 0.0
        %914 = vmatpush1.msra.mxu0 0.0
        %915 = vmatprep.subr.mxu0 0.0
        %916 = vmatpush1.msra.mxu0 0.0
        %917 = vmatprep.subr.mxu0 0.0
        %918 = vmatpush1.msra.mxu0 0.0
        %919 = vmatprep.subr.mxu0 0.0
        %920 = vmatpush1.msra.mxu0 0.0
        %921 = vmatprep.subr.mxu0 0.0
        %922 = vmatpush1.msra.mxu0 0.0
        %923 = vmatprep.subr.mxu0 0.0
        %924 = vmatpush1.msra.mxu0 0.0
        %925 = vmatprep.subr.mxu0 0.0
        %926 = vmatpush1.msra.mxu0 0.0
        %927 = vmatprep.subr.mxu0 0.0
        %928 = vmatpush1.msra.mxu0 0.0
        %929 = vmatprep.mubr.f32.mxu0 0.0
        %930 = vmatmul.mubr.f32.gmra.mrb[0].mxu0 %v863
        %v931 = vpop.f32.mrb[0].mxu0
        %v932 = vadd.f32 0.0, %v931
        %v933 = vpop.f32.mrb[0].mxu0
        %934 = vdwg.mxu0
        %935 = vmatprep.subr.mxu0 0.0
        %936 = vmatpush1.msra.mxu0 %v834
        %937 = vmatprep.subr.mxu0 0.0
        %938 = vmatpush1.msra.mxu0 %v839
        %939 = vmatprep.subr.mxu0 0.0
        %940 = vmatpush1.msra.mxu0 0.0
        %941 = vmatprep.subr.mxu0 0.0
        %942 = vmatpush1.msra.mxu0 0.0
        %943 = vmatprep.subr.mxu0 0.0
        %944 = vmatpush1.msra.mxu0 0.0
        %945 = vmatprep.subr.mxu0 0.0
        %946 = vmatpush1.msra.mxu0 0.0
        %947 = vmatprep.subr.mxu0 0.0
        %948 = vmatpush1.msra.mxu0 0.0
        %949 = vmatprep.subr.mxu0 0.0
        %950 = vmatpush1.msra.mxu0 0.0
        %951 = vmatprep.subr.mxu0 0.0
        %952 = vmatpush1.msra.mxu0 0.0
        %953 = vmatprep.subr.mxu0 0.0
        %954 = vmatpush1.msra.mxu0 0.0
        %955 = vmatprep.subr.mxu0 0.0
        %956 = vmatpush1.msra.mxu0 0.0
        %957 = vmatprep.subr.mxu0 0.0
        %958 = vmatpush1.msra.mxu0 0.0
        %959 = vmatprep.subr.mxu0 0.0
        %960 = vmatpush1.msra.mxu0 0.0
        %961 = vmatprep.subr.mxu0 0.0
        %962 = vmatpush1.msra.mxu0 0.0
        %963 = vmatprep.subr.mxu0 0.0
        %964 = vmatpush1.msra.mxu0 0.0
        %965 = vmatprep.subr.mxu0 0.0
        %966 = vmatpush1.msra.mxu0 0.0
        %967 = vmatprep.subr.mxu0 0.0
        %968 = vmatpush1.msra.mxu0 0.0
        %969 = vmatprep.subr.mxu0 0.0
        %970 = vmatpush1.msra.mxu0 0.0
        %971 = vmatprep.subr.mxu0 0.0
        %972 = vmatpush1.msra.mxu0 0.0
        %973 = vmatprep.subr.mxu0 0.0
        %974 = vmatpush1.msra.mxu0 0.0
        %975 = vmatprep.subr.mxu0 0.0
        %976 = vmatpush1.msra.mxu0 0.0
        %977 = vmatprep.subr.mxu0 0.0
        %978 = vmatpush1.msra.mxu0 0.0
        %979 = vmatprep.subr.mxu0 0.0
        %980 = vmatpush1.msra.mxu0 0.0
        %981 = vmatprep.subr.mxu0 0.0
        %982 = vmatpush1.msra.mxu0 0.0
        %983 = vmatprep.subr.mxu0 0.0
        %984 = vmatpush1.msra.mxu0 0.0
        %985 = vmatprep.subr.mxu0 0.0
        %986 = vmatpush1.msra.mxu0 0.0
        %987 = vmatprep.subr.mxu0 0.0
        %988 = vmatpush1.msra.mxu0 0.0
        %989 = vmatprep.subr.mxu0 0.0
        %990 = vmatpush1.msra.mxu0 0.0
        %991 = vmatprep.subr.mxu0 0.0
        %992 = vmatpush1.msra.mxu0 0.0
        %993 = vmatprep.subr.mxu0 0.0
        %994 = vmatpush1.msra.mxu0 0.0
        %995 = vmatprep.subr.mxu0 0.0
        %996 = vmatpush1.msra.mxu0 0.0
        %997 = vmatprep.subr.mxu0 0.0
        %998 = vmatpush1.msra.mxu0 0.0
        %999 = vmatprep.mubr.f32.mxu0 0.0
        %1000 = vmatmul.mubr.f32.gmra.mrb[0].mxu0 %v863
        %v1001 = vpop.f32.mrb[0].mxu0
        %v1002 = vadd.f32 0.0, %v1001
        %v1003 = vpop.f32.mrb[0].mxu0
        %1004 = vdwg.mxu0
        %1005 = vmatprep.subr.mxu0 0.0
        %1006 = vmatpush1.msra.mxu0 %v844
        %1007 = vmatprep.subr.mxu0 0.0
        %1008 = vmatpush1.msra.mxu0 %v849
        %1009 = vmatprep.subr.mxu0 0.0
        %1010 = vmatpush1.msra.mxu0 0.0
        %1011 = vmatprep.subr.mxu0 0.0
        %1012 = vmatpush1.msra.mxu0 0.0
        %1013 = vmatprep.subr.mxu0 0.0
        %1014 = vmatpush1.msra.mxu0 0.0
        %1015 = vmatprep.subr.mxu0 0.0
        %1016 = vmatpush1.msra.mxu0 0.0
        %1017 = vmatprep.subr.mxu0 0.0
        %1018 = vmatpush1.msra.mxu0 0.0
        %1019 = vmatprep.subr.mxu0 0.0
        %1020 = vmatpush1.msra.mxu0 0.0
        %1021 = vmatprep.subr.mxu0 0.0
        %1022 = vmatpush1.msra.mxu0 0.0
        %1023 = vmatprep.subr.mxu0 0.0
        %1024 = vmatpush1.msra.mxu0 0.0
        %1025 = vmatprep.subr.mxu0 0.0
        %1026 = vmatpush1.msra.mxu0 0.0
        %1027 = vmatprep.subr.mxu0 0.0
        %1028 = vmatpush1.msra.mxu0 0.0
        %1029 = vmatprep.subr.mxu0 0.0
        %1030 = vmatpush1.msra.mxu0 0.0
        %1031 = vmatprep.subr.mxu0 0.0
        %1032 = vmatpush1.msra.mxu0 0.0
        %1033 = vmatprep.subr.mxu0 0.0
        %1034 = vmatpush1.msra.mxu0 0.0
        %1035 = vmatprep.subr.mxu0 0.0
        %1036 = vmatpush1.msra.mxu0 0.0
        %1037 = vmatprep.subr.mxu0 0.0
        %1038 = vmatpush1.msra.mxu0 0.0
        %1039 = vmatprep.subr.mxu0 0.0
        %1040 = vmatpush1.msra.mxu0 0.0
        %1041 = vmatprep.subr.mxu0 0.0
        %1042 = vmatpush1.msra.mxu0 0.0
        %1043 = vmatprep.subr.mxu0 0.0
        %1044 = vmatpush1.msra.mxu0 0.0
        %1045 = vmatprep.subr.mxu0 0.0
        %1046 = vmatpush1.msra.mxu0 0.0
        %1047 = vmatprep.subr.mxu0 0.0
        %1048 = vmatpush1.msra.mxu0 0.0
        %1049 = vmatprep.subr.mxu0 0.0
        %1050 = vmatpush1.msra.mxu0 0.0
        %1051 = vmatprep.subr.mxu0 0.0
        %1052 = vmatpush1.msra.mxu0 0.0
        %1053 = vmatprep.subr.mxu0 0.0
        %1054 = vmatpush1.msra.mxu0 0.0
        %1055 = vmatprep.subr.mxu0 0.0
        %1056 = vmatpush1.msra.mxu0 0.0
        %1057 = vmatprep.subr.mxu0 0.0
        %1058 = vmatpush1.msra.mxu0 0.0
        %1059 = vmatprep.subr.mxu0 0.0
        %1060 = vmatpush1.msra.mxu0 0.0
        %1061 = vmatprep.subr.mxu0 0.0
        %1062 = vmatpush1.msra.mxu0 0.0
        %1063 = vmatprep.subr.mxu0 0.0
        %1064 = vmatpush1.msra.mxu0 0.0
        %1065 = vmatprep.subr.mxu0 0.0
        %1066 = vmatpush1.msra.mxu0 0.0
        %1067 = vmatprep.subr.mxu0 0.0
        %1068 = vmatpush1.msra.mxu0 0.0
        %1069 = vmatprep.mubr.f32.mxu0 0.0
        %1070 = vmatmul.mubr.f32.gmra.mrb[0].mxu0 %v863
        %v1071 = vpop.f32.mrb[0].mxu0
        %v1072 = vadd.f32 0.0, %v1071
        %v1073 = vpop.f32.mrb[0].mxu0
        %1074 = vdwg.mxu0
        %1075 = vmatprep.subr.mxu0 0.0
        %1076 = vmatpush1.msra.mxu0 %v854
        %1077 = vmatprep.subr.mxu0 0.0
        %1078 = vmatpush1.msra.mxu0 %v859
        %1079 = vmatprep.subr.mxu0 0.0
        %1080 = vmatpush1.msra.mxu0 0.0
        %1081 = vmatprep.subr.mxu0 0.0
        %1082 = vmatpush1.msra.mxu0 0.0
        %1083 = vmatprep.subr.mxu0 0.0
        %1084 = vmatpush1.msra.mxu0 0.0
        %1085 = vmatprep.subr.mxu0 0.0
        %1086 = vmatpush1.msra.mxu0 0.0
        %1087 = vmatprep.subr.mxu0 0.0
        %1088 = vmatpush1.msra.mxu0 0.0
        %1089 = vmatprep.subr.mxu0 0.0
        %1090 = vmatpush1.msra.mxu0 0.0
        %1091 = vmatprep.subr.mxu0 0.0
        %1092 = vmatpush1.msra.mxu0 0.0
        %1093 = vmatprep.subr.mxu0 0.0
        %1094 = vmatpush1.msra.mxu0 0.0
        %1095 = vmatprep.subr.mxu0 0.0
        %1096 = vmatpush1.msra.mxu0 0.0
        %1097 = vmatprep.subr.mxu0 0.0
        %1098 = vmatpush1.msra.mxu0 0.0
        %1099 = vmatprep.subr.mxu0 0.0
        %1100 = vmatpush1.msra.mxu0 0.0
        %1101 = vmatprep.subr.mxu0 0.0
        %1102 = vmatpush1.msra.mxu0 0.0
        %1103 = vmatprep.subr.mxu0 0.0
        %1104 = vmatpush1.msra.mxu0 0.0
        %1105 = vmatprep.subr.mxu0 0.0
        %1106 = vmatpush1.msra.mxu0 0.0
        %1107 = vmatprep.subr.mxu0 0.0
        %1108 = vmatpush1.msra.mxu0 0.0
        %1109 = vmatprep.subr.mxu0 0.0
        %1110 = vmatpush1.msra.mxu0 0.0
        %1111 = vmatprep.subr.mxu0 0.0
        %1112 = vmatpush1.msra.mxu0 0.0
        %1113 = vmatprep.subr.mxu0 0.0
        %1114 = vmatpush1.msra.mxu0 0.0
        %1115 = vmatprep.subr.mxu0 0.0
        %1116 = vmatpush1.msra.mxu0 0.0
        %1117 = vmatprep.subr.mxu0 0.0
        %1118 = vmatpush1.msra.mxu0 0.0
        %1119 = vmatprep.subr.mxu0 0.0
        %1120 = vmatpush1.msra.mxu0 0.0
        %1121 = vmatprep.subr.mxu0 0.0
        %1122 = vmatpush1.msra.mxu0 0.0
        %1123 = vmatprep.subr.mxu0 0.0
        %1124 = vmatpush1.msra.mxu0 0.0
        %1125 = vmatprep.subr.mxu0 0.0
        %1126 = vmatpush1.msra.mxu0 0.0
        %1127 = vmatprep.subr.mxu0 0.0
        %1128 = vmatpush1.msra.mxu0 0.0
        %1129 = vmatprep.subr.mxu0 0.0
        %1130 = vmatpush1.msra.mxu0 0.0
        %1131 = vmatprep.subr.mxu0 0.0
        %1132 = vmatpush1.msra.mxu0 0.0
        %1133 = vmatprep.subr.mxu0 0.0
        %1134 = vmatpush1.msra.mxu0 0.0
        %1135 = vmatprep.subr.mxu0 0.0
        %1136 = vmatpush1.msra.mxu0 0.0
        %1137 = vmatprep.subr.mxu0 0.0
        %1138 = vmatpush1.msra.mxu0 0.0
        %1139 = vmatprep.mubr.f32.mxu0 0.0
        %1140 = vmatmul.mubr.f32.gmra.mrb[0].mxu0 %v863
        %v1141 = vpop.f32.mrb[0].mxu0
        %v1142 = vadd.f32 0.0, %v1141
        %v1143 = vpop.f32.mrb[0].mxu0
        %1144 = vdwg.mxu0
        %vm1145 = vcmask 27648
        %1146 = vst.msk [vmem:[%s321] sm:$0xf] %vm1145, %v932
        %1147 = vst.msk [vmem:[%s321 + $0x4] sm:$0xf] %vm1145, %v1002
        %1148 = vst.msk [vmem:[%s321 + $0x8] sm:$0xf] %vm1145, %v1072
        %1149 = vst.msk [vmem:[%s321 + $0xc] sm:$0xf] %vm1145, %v1142
        %s1150 = sand.u32 %s147, 1
        %s1151 = scalar_lea.sflag [#allocation4], %s1150
        %s1152 = sand.u32 %s147, 1
        %s1153 = smul.addr %s1152, 32
        %s1154 = scalar_lea.vmem [#allocation10], %s1153
        %s1155 = sand.u32 %s173, 1
        %s1156 = scalar_lea.sflag [#allocation12], %s1155
        %s1157 = sand.u32 %s173, 1
        %s1158 = smul.addr %s1157, 16
        %s1159 = scalar_lea.vmem [#allocation11], %s1158
        // Predicated region
        $region57: #{_lambda_.1} parent=39 // pred_check
          %p1160 = pneg %p157
        $region58: #{_lambda_.1} parent=39 // pred_check_branch
          %1162 = sbr.rel (%p1160) target = $region60
        $region59: #{_lambda_.1} parent=39 // pred_region
          %s1163 = smul.u32 4, %s29
          %s1165 = ssub.s32 512, 512
          %1166 = vsyncadd %s1151, %s1165
          %s1167 = smul.addr %s1163, 128
          %s1168 = scalar_lea.hbm %s5, %s1167
          %s1169 = sshll.u32 %s1154, 4
          %s1170 = int_to_ptr.vmem [resolvable:$true] %s1169
          %1175 = dma.vmem_to_hbm [thread:$0]  %s1170, 512, %s1168, %s1151, 128, 128, 8
        $region60: #{_lambda_.1} parent=39 // pred_fallthru
          _
        // Predicated region
        $region61: #{_lambda_.1} parent=39 // pred_check
          %p1176 = pneg %p183
        $region62: #{_lambda_.1} parent=39 // pred_check_branch
          %1178 = sbr.rel (%p1176) target = $region64
        $region63: #{_lambda_.1} parent=39 // pred_region
          %s1179 = smul.u32 4, %s29
          %s1181 = ssub.s32 256, 256
          %1182 = vsyncadd %s1156, %s1181
          %s1183 = smul.addr %s1179, 64
          %s1184 = scalar_lea.hbm %s6, %s1183
          %s1185 = sshll.u32 %s1159, 4
          %s1186 = int_to_ptr.vmem [resolvable:$true] %s1185
          %1191 = dma.vmem_to_hbm [thread:$0]  %s1186, 256, %s1184, %s1156, 64, 64, 4
        $region64: #{_lambda_.1} parent=39 // pred_fallthru
          _
      $region40: #{_lambda_.1} parent=5 // pred_fallthru
        _
      %p1192 = scmp.le.s32.totalorder 2, %s24
      // Predicated region
      $region65: #{_lambda_.1} parent=5 // pred_check
        %p1193 = pneg %p1192
      $region66: #{_lambda_.1} parent=5 // pred_check_branch
        %1195 = sbr.rel (%p1193) target = $region68
      $region67: #{_lambda_.1} parent=5 // pred_region
        %s1196 = ssub.s32 %s24, 2
        // Predicated region
        $region69: #{_lambda_.1} parent=67 // pred_check
          %p1197 = pneg %p163
        $region70: #{_lambda_.1} parent=67 // pred_check_branch
          %1199 = sbr.rel (%p1197) target = $region72
        $region71: #{_lambda_.1} parent=67 // pred_region
          %s1200 = sand.u32 %s148, 1
          %s1201 = scalar_lea.sflag [#allocation4], %s1200
          %s1202 = sand.u32 %s148, 1
          %s1203 = smul.addr %s1202, 32
          %s1204 = scalar_lea.vmem [#allocation10], %s1203
          %1205 = dma.done %s1201, 512
        $region72: #{_lambda_.1} parent=67 // pred_fallthru
          _
        // Predicated region
        $region73: #{_lambda_.1} parent=67 // pred_check
          %p1206 = pneg %p189
        $region74: #{_lambda_.1} parent=67 // pred_check_branch
          %1208 = sbr.rel (%p1206) target = $region76
        $region75: #{_lambda_.1} parent=67 // pred_region
          %s1209 = sand.u32 %s174, 1
          %s1210 = scalar_lea.sflag [#allocation12], %s1209
          %s1211 = sand.u32 %s174, 1
          %s1212 = smul.addr %s1211, 16
          %s1213 = scalar_lea.vmem [#allocation11], %s1212
          %1214 = dma.done %s1210, 256
        $region76: #{_lambda_.1} parent=67 // pred_fallthru
          _
      $region68: #{_lambda_.1} parent=5 // pred_fallthru
        _
    $region6: #{_lambda_.1} parent=1 // loop_footer
      %s28 = sadd.s32 1, %s24
    $region7: #{_lambda_.1} parent=1 // loop_footer_branch
      %23 = sbr.rel target = $region3
    $region8: #{_lambda_.1} parent=1 // loop_exit
      _
    %1215 = vsyncpa [#allocation3], 1
    %s1216 = scalar_lea.sflag [#allocation3], 1
    %1217 = vsyncpa %s1216, 1
    %1218 = vsyncpa [#allocation6], 1
    %1219 = vsyncpa [#allocation9], 1
    %1220 = vsyncpa [#allocation4], 1
    %s1221 = scalar_lea.sflag [#allocation4], 1
    %1222 = vsyncpa %s1221, 1
    %1223 = vsyncpa [#allocation12], 1
    %s1224 = scalar_lea.sflag [#allocation12], 1
    %1225 = vsyncpa %s1224, 1

</llo_original>
